<compile_context>
chip_gen: v7x
topology: tpu7x:2x2x1
jax: 0.10.0
libtpu: 0.0.40
codegen_flags: <defaults>
</compile_context>

<pallas_src>
import functools

import jax
import jax.numpy as jnp
from jax import lax
from jax.experimental import pallas as pl
from jax.experimental.pallas import tpu as pltpu


_TAPS = tuple((dy, dx) for dy in range(3) for dx in range(3))


def _round_up(x, m):
    return (x + m - 1) // m * m


def _sublane_granule(dtype):
    # native second-minor tile: 8 rows for 4-byte dtypes, 16 for 2-byte.
    return 8 * (4 // jnp.dtype(dtype).itemsize)


def _vmem_limit_bytes():
    cap = None
    try:
        info = pltpu.get_tpu_info()
        for name in ("vmem_capacity_bytes", "vmem_size_bytes", "vmem_bytes"):
            cap = getattr(info, name, None)
            if cap:
                break
    except Exception:
        cap = None
    if not cap:
        cap = 64 * 1024 * 1024          # conservative default: v7x per-TC VMEM
    # leave ~40% headroom for compiler scratch / double-buffering slack
    return int(min(cap * 0.6, 96 * 1024 * 1024))


def _basic_kernel(x_ref, mask_ref, *refs,
                  W, compute_dtype, has_prelu0, has_shortcut, c0):
    """Fused PReLU -> conv3x3 -> PReLU -> conv3x3 (+ shortcut), channel-major.

    x_ref    : (C0p, T)        f32    activations, images back-to-back on lanes
    mask_ref : (9, T)          cdtype 0/1 halo mask per 3x3 tap
    a0_ref   : (C0p, 1)        f32    PReLU-1 slopes (only if has_prelu0)
    w1_ref   : (C1p, 9*C0p)    cdtype conv1 weights, taps stacked along K
    b1_ref   : (C1p, 1)        f32    conv1 bias (zero on padded rows)
    a1_ref   : (C1p, 1)        f32    PReLU-2 slopes
    w2_ref   : (C2, 9*C1p)     cdtype conv2 weights, taps stacked along K
    b2_ref   : (C2, 1)         f32    conv2 bias (+ shortcut bias if present)
    ws_ref   : (C2, C0p)       cdtype 1x1 shortcut weight (only if has_shortcut)
    o_ref    : (C2, T)         f32    output
    """
    it = iter(refs)
    a0_ref = next(it) if has_prelu0 else None
    w1_ref = next(it)
    b1_ref = next(it)
    a1_ref = next(it)
    w2_ref = next(it)
    b2_ref = next(it)
    ws_ref = next(it) if has_shortcut else None
    o_ref = next(it)

    x = x_ref[...]                                   # (C0p, T) f32
    T = x.shape[-1]
    masks = mask_ref[...]                            # (9, T) compute_dtype

    # PReLU-1 (f32, VPU); statically skipped for the 'conv-relu-conv' variant.
    y0 = jnp.where(x > 0, x, a0_ref[...] * x) if has_prelu0 else x

    def conv3x3(act_f32, w_ref, bias):
        # Hoisted cast: one f32 -> compute_dtype convert per conv (not per tap).
        act = act_f32.astype(compute_dtype)          # (Cin_p, T)
        pieces = []
        for t, (dy, dx) in enumerate(_TAPS):
            s = (dy - 1) * W + (dx - 1)              # flat spatial shift
            if s == 0:
                pieces.append(act)                   # center tap: no shift/mask
            else:
                # XLU lane rotate + 0/1 halo mask (zeroes wrapped / OOB taps,
                # including any bleed across adjacent images on the lane axis).
                pieces.append(pltpu.roll(act, shift=(-s) % T, axis=1)
                              * masks[t:t + 1, :])
        patch = jnp.concatenate(pieces, axis=0)      # (9*Cin_p, T), tile-aligned
        # One MXU matmul per conv (K = 9*Cin_p), f32 accumulation.
        return jnp.dot(w_ref[...], patch,
                       preferred_element_type=jnp.float32) + bias

    acc1 = conv3x3(y0, w1_ref, b1_ref[...])          # (C1p, T) f32
    y1 = jnp.where(acc1 > 0, acc1, a1_ref[...] * acc1)   # PReLU-2 (f32)
    acc2 = conv3x3(y1, w2_ref, b2_ref[...])          # (C2, T) f32

    if has_shortcut:
        acc2 = acc2 + jnp.dot(ws_ref[...], x.astype(compute_dtype),
                              preferred_element_type=jnp.float32)
    else:
        acc2 = acc2 + x[:c0, :]                      # exact f32 residual add

    o_ref[...] = acc2.astype(o_ref.dtype)


def basic_block(x_nchw, params, *, compute_dtype=jnp.bfloat16):
    """Pallas forward of `Basic`. x_nchw: (B, C0, H, W) float32 (PyTorch layout)."""
    a0, w1, b1, a1, w2, b2, ws, bs = params
    B, C0, H, W = x_nchw.shape
    C1, C2 = w1.shape[3], w2.shape[3]
    HW = H * W
    N = B * HW
    has_shortcut = ws is not None
    has_prelu0 = a0 is not None

    f32 = jnp.float32
    g = _sublane_granule(compute_dtype)
    C0p = _round_up(C0, g)
    C1p = _round_up(C1, g)

    # --- one-time weight / bias prep (host-side jnp, constant-folded) --------
    def stack_taps(w, cin, cout, cin_pad, cout_pad):
        # HWIO (3,3,cin,cout) -> (cout_pad, 9*cin_pad); K order = tap-major,
        # channel-minor, matching the in-kernel concatenation. Padding is zero.
        wt = jnp.transpose(w.reshape(9, cin, cout), (2, 0, 1))       # (cout,9,cin)
        wt = jnp.pad(wt, ((0, cout_pad - cout), (0, 0), (0, cin_pad - cin)))
        return wt.reshape(cout_pad, 9 * cin_pad).astype(compute_dtype)

    w1s = stack_taps(w1, C0, C1, C0p, C1p)            # (C1p, 9*C0p)
    w2s = stack_taps(w2, C1, C2, C1p, C2)             # (C2,  9*C1p)
    b1c = jnp.pad(b1, (0, C1p - C1)).reshape(C1p, 1).astype(f32)
    a1c = jnp.pad(a1, (0, C1p - C1)).reshape(C1p, 1).astype(f32)
    b2c = ((b2 + bs) if has_shortcut else b2).reshape(C2, 1).astype(f32)
    a0c = (jnp.pad(a0, (0, C0p - C0)).reshape(C0p, 1).astype(f32)
           if has_prelu0 else None)
    ws_k = (jnp.pad(ws.T, ((0, 0), (0, C0p - C0))).astype(compute_dtype)
            if has_shortcut else None)                # (C2, C0p)

    # Halo masks: one 0/1 row per 3x3 tap over the flattened H*W positions,
    # stored directly in the compute dtype (0/1 exact in bf16).
    yy, xx = jnp.meshgrid(jnp.arange(H), jnp.arange(W), indexing='ij')
    yy, xx = yy.reshape(-1), xx.reshape(-1)
    mask_img = jnp.stack(
        [((yy + dy - 1 >= 0) & (yy + dy - 1 < H) &
          (xx + dx - 1 >= 0) & (xx + dx - 1 < W))
         for dy, dx in _TAPS], axis=0).astype(compute_dtype)          # (9, HW)

    # NCHW -> channel-major (C0p, B*HW): batch folded into the lane axis.
    x_cm = jnp.transpose(x_nchw.reshape(B, C0, HW), (1, 0, 2)).reshape(C0, N)
    x_cm = jnp.pad(x_cm, ((0, C0p - C0), (0, 0))).astype(f32)

    # --- lane-tile selection: whole images per grid step, sized to VMEM ------
    vmem_limit = _vmem_limit_bytes()
    bpe = jnp.dtype(compute_dtype).itemsize
    per_col = (4 * (2 * C0p + 2 * C1p + 2 * C2)            # f32 intermediates
               + bpe * (9 * C0p + 9 * C1p + C0p + C1p + 9))  # patches/casts/masks
    budget = vmem_limit // 2
    imgs = max(1, min(B, budget // max(per_col * HW, 1)))
    while B % imgs:
        imgs -= 1
    T = imgs * HW
    n_steps = B // imgs
    if n_steps > 1 and T % 128 != 0:
        # Block last dim must be a multiple of 128 unless it spans the array.
        imgs, T, n_steps = B, N, 1

    masks_t = jnp.tile(mask_img, (1, imgs))                 # (9, T)

    operands = [x_cm, masks_t]
    in_specs = [
        pl.BlockSpec((C0p, T), lambda i: (0, i)),
        pl.BlockSpec((9, T), lambda i: (0, 0)),
    ]
    if has_prelu0:
        operands.append(a0c)
        in_specs.append(pl.BlockSpec((C0p, 1), lambda i: (0, 0)))
    operands += [w1s, b1c, a1c, w2s, b2c]
    in_specs += [
        pl.BlockSpec((C1p, 9 * C0p), lambda i: (0, 0)),
        pl.BlockSpec((C1p, 1), lambda i: (0, 0)),
        pl.BlockSpec((C1p, 1), lambda i: (0, 0)),
        pl.BlockSpec((C2, 9 * C1p), lambda i: (0, 0)),
        pl.BlockSpec((C2, 1), lambda i: (0, 0)),
    ]
    if has_shortcut:
        operands.append(ws_k)
        in_specs.append(pl.BlockSpec((C2, C0p), lambda i: (0, 0)))

    kernel = functools.partial(_basic_kernel, W=W, compute_dtype=compute_dtype,
                               has_prelu0=has_prelu0, has_shortcut=has_shortcut,
                               c0=C0)

    out = pl.pallas_call(
        kernel,
        out_shape=jax.ShapeDtypeStruct((C2, N), f32),
        grid_spec=pltpu.PrefetchScalarGridSpec(
            num_scalar_prefetch=0,
            grid=(n_steps,),
            in_specs=in_specs,
            # lane-dense output: last dim is a whole-image multiple -> unmasked vst
            out_specs=pl.BlockSpec((C2, T), lambda i: (0, i)),
        ),
        compiler_params=pltpu.CompilerParams(
            dimension_semantics=("parallel",),
            vmem_limit_bytes=vmem_limit),
    )(*operands)

    # channel-major (C2, B*HW) -> NCHW
    return jnp.transpose(out.reshape(C2, B, HW), (1, 0, 2)).reshape(B, C2, H, W)


def make_params(key, strType, intChannels):
    """Deterministic synthetic parameters matching Basic.__init__ shapes."""
    C0, C1, C2 = intChannels
    ks = jax.random.split(key, 6)
    # 'conv-relu-conv' has no leading PReLU -> a0 is None (skipped statically).
    a0 = (jnp.full((C0,), 0.25, jnp.float32)
          if strType == 'relu-conv-relu-conv' else None)
    a1 = jnp.full((C1,), 0.25, jnp.float32)
    w1 = 0.1 * jax.random.normal(ks[0], (3, 3, C0, C1), jnp.float32)
    b1 = 0.1 * jax.random.normal(ks[1], (C1,), jnp.float32)
    w2 = 0.1 * jax.random.normal(ks[2], (3, 3, C1, C2), jnp.float32)
    b2 = 0.1 * jax.random.normal(ks[3], (C2,), jnp.float32)
    if C0 == C2:
        ws, bs = None, None                     # netShortcut is None
    else:
        ws = 0.1 * jax.random.normal(ks[4], (C0, C2), jnp.float32)
        bs = 0.1 * jax.random.normal(ks[5], (C2,), jnp.float32)
    return (a0, w1, b1, a1, w2, b2, ws, bs)


def reference(x_nchw, params):
    """Pure-JAX f32 reference mirroring the PyTorch forward (for validation)."""
    a0, w1, b1, a1, w2, b2, ws, bs = params
    x = jnp.transpose(x_nchw, (0, 2, 3, 1))

    def prelu(v, a):
        return jnp.where(v > 0, v, a.reshape(1, 1, 1, -1) * v)

    def conv3(v, w, b):
        y = lax.conv_general_dilated(
            v, w, window_strides=(1, 1), padding=((1, 1), (1, 1)),
            dimension_numbers=('NHWC', 'HWIO', 'NHWC'))
        return y + b.reshape(1, 1, 1, -1)

    y = prelu(x, a0) if a0 is not None else x
    y = conv3(y, w1, b1)
    y = prelu(y, a1)
    y = conv3(y, w2, b2)
    if ws is None:
        y = y + x
    else:
        y = y + jnp.einsum('bhwc,cd->bhwd', x, ws) + bs.reshape(1, 1, 1, -1)
    return jnp.transpose(y, (0, 3, 1, 2))


if __name__ == "__main__":
    key = jax.random.PRNGKey(0)
    kx, kp1, kp2, kp3 = jax.random.split(key, 4)
    x = jax.random.normal(kx, (2, 4, 16, 16), jnp.float32)

    # Case 1: intChannels[0] == intChannels[2] -> netShortcut is None.
    params1 = make_params(kp1, 'relu-conv-relu-conv', [4, 8, 4])
    ref1 = reference(x, params1)
    out1 = jax.block_until_ready(basic_block(x, params1, compute_dtype=jnp.float32))
    assert out1.shape == (2, 4, 16, 16)
    assert jnp.allclose(out1, ref1, atol=1e-2, rtol=1e-2), "mismatch f32/no-shortcut"

    # Same case, bf16 MXU operands (default fast path).
    out1b = jax.block_until_ready(basic_block(x, params1))
    assert jnp.allclose(out1b, ref1, atol=5e-2, rtol=5e-2), "mismatch bf16/no-shortcut"

    # Case 2: intChannels[0] != intChannels[2] -> learned 1x1 shortcut (folded).
    params2 = make_params(kp2, 'relu-conv-relu-conv', [4, 8, 6])
    out2 = jax.block_until_ready(basic_block(x, params2))
    ref2 = reference(x, params2)
    assert out2.shape == (2, 6, 16, 16)
    assert jnp.allclose(out2, ref2, atol=5e-2, rtol=5e-2), "mismatch shortcut"

    # Case 3: 'conv-relu-conv' variant (leading PReLU statically skipped).
    params3 = make_params(kp3, 'conv-relu-conv', [4, 8, 4])
    out3 = jax.block_until_ready(basic_block(x, params3, compute_dtype=jnp.float32))
    ref3 = reference(x, params3)
    assert jnp.allclose(out3, ref3, atol=1e-2, rtol=1e-2), "mismatch conv-relu-conv"

    print("KERNEL_OK")
</pallas_src>

<mosaic_0001>
module attributes {stable_mosaic.version = 11 : i64} {
  func.func @_basic_kernel(%arg0: i32, %arg1: memref<8x512xf32, #tpu.memory_space<vmem>>, %arg2: memref<9x512xf32, #tpu.memory_space<vmem>>, %arg3: memref<8x1xf32, #tpu.memory_space<vmem>>, %arg4: memref<8x72xf32, #tpu.memory_space<vmem>>, %arg5: memref<8x1xf32, #tpu.memory_space<vmem>>, %arg6: memref<8x1xf32, #tpu.memory_space<vmem>>, %arg7: memref<4x72xf32, #tpu.memory_space<vmem>>, %arg8: memref<4x1xf32, #tpu.memory_space<vmem>>, %arg9: memref<4x512xf32, #tpu.memory_space<vmem>>) attributes {dimension_semantics = [#tpu.dimension_semantics<parallel>], iteration_bounds = array<i64: 1>, scalar_prefetch = 0 : i64, scratch_operands = 0 : i64, tpu.core_type = #tpu.core_type<tc>, window_params = [{transform_indices = @transform_0, window_bounds = array<i64: 8, 512>}, {pipeline_mode = #tpu.pipeline_mode<synchronous>, transform_indices = @transform_1, window_bounds = array<i64: 9, 512>}, {pipeline_mode = #tpu.pipeline_mode<synchronous>, transform_indices = @transform_2, window_bounds = array<i64: 8, 1>}, {pipeline_mode = #tpu.pipeline_mode<synchronous>, transform_indices = @transform_3, window_bounds = array<i64: 8, 72>}, {pipeline_mode = #tpu.pipeline_mode<synchronous>, transform_indices = @transform_4, window_bounds = array<i64: 8, 1>}, {pipeline_mode = #tpu.pipeline_mode<synchronous>, transform_indices = @transform_5, window_bounds = array<i64: 8, 1>}, {pipeline_mode = #tpu.pipeline_mode<synchronous>, transform_indices = @transform_6, window_bounds = array<i64: 4, 72>}, {pipeline_mode = #tpu.pipeline_mode<synchronous>, transform_indices = @transform_7, window_bounds = array<i64: 4, 1>}, {transform_indices = @transform_8, window_bounds = array<i64: 4, 512>}]} {
    %c0 = arith.constant 0 : index
    %c0_0 = arith.constant 0 : index
    %0 = vector.load %arg1[%c0, %c0_0] : memref<8x512xf32, #tpu.memory_space<vmem>>, vector<8x512xf32>
    %c0_1 = arith.constant 0 : index
    %c0_2 = arith.constant 0 : index
    %1 = vector.load %arg2[%c0_1, %c0_2] : memref<9x512xf32, #tpu.memory_space<vmem>>, vector<9x512xf32>
    %cst = arith.constant 0.000000e+00 : f32
    %2 = vector.broadcast %cst : f32 to vector<8x512xf32>
    %3 = arith.cmpf ogt, %0, %2 : vector<8x512xf32>
    %c0_3 = arith.constant 0 : index
    %c0_4 = arith.constant 0 : index
    %4 = vector.load %arg3[%c0_3, %c0_4] : memref<8x1xf32, #tpu.memory_space<vmem>>, vector<8x1xf32>
    %5 = vector.broadcast %4 : vector<8x1xf32> to vector<8x512xf32>
    %6 = arith.mulf %5, %0 : vector<8x512xf32>
    %7 = arith.select %3, %0, %6 : vector<8x512xi1>, vector<8x512xf32>
    %c0_5 = arith.constant 0 : index
    %c0_6 = arith.constant 0 : index
    %8 = vector.load %arg5[%c0_5, %c0_6] : memref<8x1xf32, #tpu.memory_space<vmem>>, vector<8x1xf32>
    %c17_i32 = arith.constant 17 : i32
    %9 = tpu.dynamic_rotate %7 by %c17_i32 dim 1 : vector<8x512xf32>, i32 -> vector<8x512xf32>
    %10 = vector.extract_strided_slice %1 {offsets = [0, 0], sizes = [1, 512], strides = [1, 1]} : vector<9x512xf32> to vector<1x512xf32>
    %11 = vector.broadcast %10 : vector<1x512xf32> to vector<8x512xf32>
    %12 = arith.mulf %9, %11 : vector<8x512xf32>
    %c16_i32 = arith.constant 16 : i32
    %13 = tpu.dynamic_rotate %7 by %c16_i32 dim 1 : vector<8x512xf32>, i32 -> vector<8x512xf32>
    %14 = vector.extract_strided_slice %1 {offsets = [1, 0], sizes = [1, 512], strides = [1, 1]} : vector<9x512xf32> to vector<1x512xf32>
    %15 = vector.broadcast %14 : vector<1x512xf32> to vector<8x512xf32>
    %16 = arith.mulf %13, %15 : vector<8x512xf32>
    %c15_i32 = arith.constant 15 : i32
    %17 = tpu.dynamic_rotate %7 by %c15_i32 dim 1 : vector<8x512xf32>, i32 -> vector<8x512xf32>
    %18 = vector.extract_strided_slice %1 {offsets = [2, 0], sizes = [1, 512], strides = [1, 1]} : vector<9x512xf32> to vector<1x512xf32>
    %19 = vector.broadcast %18 : vector<1x512xf32> to vector<8x512xf32>
    %20 = arith.mulf %17, %19 : vector<8x512xf32>
    %c1_i32 = arith.constant 1 : i32
    %21 = tpu.dynamic_rotate %7 by %c1_i32 dim 1 : vector<8x512xf32>, i32 -> vector<8x512xf32>
    %22 = vector.extract_strided_slice %1 {offsets = [3, 0], sizes = [1, 512], strides = [1, 1]} : vector<9x512xf32> to vector<1x512xf32>
    %23 = vector.broadcast %22 : vector<1x512xf32> to vector<8x512xf32>
    %24 = arith.mulf %21, %23 : vector<8x512xf32>
    %c511_i32 = arith.constant 511 : i32
    %25 = tpu.dynamic_rotate %7 by %c511_i32 dim 1 : vector<8x512xf32>, i32 -> vector<8x512xf32>
    %26 = vector.extract_strided_slice %1 {offsets = [5, 0], sizes = [1, 512], strides = [1, 1]} : vector<9x512xf32> to vector<1x512xf32>
    %27 = vector.broadcast %26 : vector<1x512xf32> to vector<8x512xf32>
    %28 = arith.mulf %25, %27 : vector<8x512xf32>
    %c497_i32 = arith.constant 497 : i32
    %29 = tpu.dynamic_rotate %7 by %c497_i32 dim 1 : vector<8x512xf32>, i32 -> vector<8x512xf32>
    %30 = vector.extract_strided_slice %1 {offsets = [6, 0], sizes = [1, 512], strides = [1, 1]} : vector<9x512xf32> to vector<1x512xf32>
    %31 = vector.broadcast %30 : vector<1x512xf32> to vector<8x512xf32>
    %32 = arith.mulf %29, %31 : vector<8x512xf32>
    %c496_i32 = arith.constant 496 : i32
    %33 = tpu.dynamic_rotate %7 by %c496_i32 dim 1 : vector<8x512xf32>, i32 -> vector<8x512xf32>
    %34 = vector.extract_strided_slice %1 {offsets = [7, 0], sizes = [1, 512], strides = [1, 1]} : vector<9x512xf32> to vector<1x512xf32>
    %35 = vector.broadcast %34 : vector<1x512xf32> to vector<8x512xf32>
    %36 = arith.mulf %33, %35 : vector<8x512xf32>
    %c495_i32 = arith.constant 495 : i32
    %37 = tpu.dynamic_rotate %7 by %c495_i32 dim 1 : vector<8x512xf32>, i32 -> vector<8x512xf32>
    %38 = vector.extract_strided_slice %1 {offsets = [8, 0], sizes = [1, 512], strides = [1, 1]} : vector<9x512xf32> to vector<1x512xf32>
    %39 = vector.broadcast %38 : vector<1x512xf32> to vector<8x512xf32>
    %40 = arith.mulf %37, %39 : vector<8x512xf32>
    %41 = tpu.concatenate %12, %16, %20, %24, %7, %28, %32, %36, %40 in 0 : vector<8x512xf32>, vector<8x512xf32>, vector<8x512xf32>, vector<8x512xf32>, vector<8x512xf32>, vector<8x512xf32>, vector<8x512xf32>, vector<8x512xf32>, vector<8x512xf32> -> vector<72x512xf32>
    %c0_7 = arith.constant 0 : index
    %c0_8 = arith.constant 0 : index
    %42 = vector.load %arg4[%c0_7, %c0_8] : memref<8x72xf32, #tpu.memory_space<vmem>>, vector<8x72xf32>
    %cst_9 = arith.constant dense<0.000000e+00> : vector<8x512xf32>
    %43 = tpu.matmul %42, %41, %cst_9 {dimension_numbers = #tpu.dot_dimension_numbers<[1], [0], [0], [1], [0, 0, 1, 1], [], []>} : vector<8x72xf32>, vector<72x512xf32>, vector<8x512xf32> -> vector<8x512xf32>
    %44 = vector.broadcast %8 : vector<8x1xf32> to vector<8x512xf32>
    %45 = arith.addf %43, %44 : vector<8x512xf32>
    %cst_10 = arith.constant 0.000000e+00 : f32
    %46 = vector.broadcast %cst_10 : f32 to vector<8x512xf32>
    %47 = arith.cmpf ogt, %45, %46 : vector<8x512xf32>
    %c0_11 = arith.constant 0 : index
    %c0_12 = arith.constant 0 : index
    %48 = vector.load %arg6[%c0_11, %c0_12] : memref<8x1xf32, #tpu.memory_space<vmem>>, vector<8x1xf32>
    %49 = vector.broadcast %48 : vector<8x1xf32> to vector<8x512xf32>
    %50 = arith.mulf %49, %45 : vector<8x512xf32>
    %51 = arith.select %47, %45, %50 : vector<8x512xi1>, vector<8x512xf32>
    %c0_13 = arith.constant 0 : index
    %c0_14 = arith.constant 0 : index
    %52 = vector.load %arg8[%c0_13, %c0_14] : memref<4x1xf32, #tpu.memory_space<vmem>>, vector<4x1xf32>
    %c17_i32_15 = arith.constant 17 : i32
    %53 = tpu.dynamic_rotate %51 by %c17_i32_15 dim 1 : vector<8x512xf32>, i32 -> vector<8x512xf32>
    %54 = vector.extract_strided_slice %1 {offsets = [0, 0], sizes = [1, 512], strides = [1, 1]} : vector<9x512xf32> to vector<1x512xf32>
    %55 = vector.broadcast %54 : vector<1x512xf32> to vector<8x512xf32>
    %56 = arith.mulf %53, %55 : vector<8x512xf32>
    %c16_i32_16 = arith.constant 16 : i32
    %57 = tpu.dynamic_rotate %51 by %c16_i32_16 dim 1 : vector<8x512xf32>, i32 -> vector<8x512xf32>
    %58 = vector.extract_strided_slice %1 {offsets = [1, 0], sizes = [1, 512], strides = [1, 1]} : vector<9x512xf32> to vector<1x512xf32>
    %59 = vector.broadcast %58 : vector<1x512xf32> to vector<8x512xf32>
    %60 = arith.mulf %57, %59 : vector<8x512xf32>
    %c15_i32_17 = arith.constant 15 : i32
    %61 = tpu.dynamic_rotate %51 by %c15_i32_17 dim 1 : vector<8x512xf32>, i32 -> vector<8x512xf32>
    %62 = vector.extract_strided_slice %1 {offsets = [2, 0], sizes = [1, 512], strides = [1, 1]} : vector<9x512xf32> to vector<1x512xf32>
    %63 = vector.broadcast %62 : vector<1x512xf32> to vector<8x512xf32>
    %64 = arith.mulf %61, %63 : vector<8x512xf32>
    %c1_i32_18 = arith.constant 1 : i32
    %65 = tpu.dynamic_rotate %51 by %c1_i32_18 dim 1 : vector<8x512xf32>, i32 -> vector<8x512xf32>
    %66 = vector.extract_strided_slice %1 {offsets = [3, 0], sizes = [1, 512], strides = [1, 1]} : vector<9x512xf32> to vector<1x512xf32>
    %67 = vector.broadcast %66 : vector<1x512xf32> to vector<8x512xf32>
    %68 = arith.mulf %65, %67 : vector<8x512xf32>
    %c511_i32_19 = arith.constant 511 : i32
    %69 = tpu.dynamic_rotate %51 by %c511_i32_19 dim 1 : vector<8x512xf32>, i32 -> vector<8x512xf32>
    %70 = vector.extract_strided_slice %1 {offsets = [5, 0], sizes = [1, 512], strides = [1, 1]} : vector<9x512xf32> to vector<1x512xf32>
    %71 = vector.broadcast %70 : vector<1x512xf32> to vector<8x512xf32>
    %72 = arith.mulf %69, %71 : vector<8x512xf32>
    %c497_i32_20 = arith.constant 497 : i32
    %73 = tpu.dynamic_rotate %51 by %c497_i32_20 dim 1 : vector<8x512xf32>, i32 -> vector<8x512xf32>
    %74 = vector.extract_strided_slice %1 {offsets = [6, 0], sizes = [1, 512], strides = [1, 1]} : vector<9x512xf32> to vector<1x512xf32>
    %75 = vector.broadcast %74 : vector<1x512xf32> to vector<8x512xf32>
    %76 = arith.mulf %73, %75 : vector<8x512xf32>
    %c496_i32_21 = arith.constant 496 : i32
    %77 = tpu.dynamic_rotate %51 by %c496_i32_21 dim 1 : vector<8x512xf32>, i32 -> vector<8x512xf32>
    %78 = vector.extract_strided_slice %1 {offsets = [7, 0], sizes = [1, 512], strides = [1, 1]} : vector<9x512xf32> to vector<1x512xf32>
    %79 = vector.broadcast %78 : vector<1x512xf32> to vector<8x512xf32>
    %80 = arith.mulf %77, %79 : vector<8x512xf32>
    %c495_i32_22 = arith.constant 495 : i32
    %81 = tpu.dynamic_rotate %51 by %c495_i32_22 dim 1 : vector<8x512xf32>, i32 -> vector<8x512xf32>
    %82 = vector.extract_strided_slice %1 {offsets = [8, 0], sizes = [1, 512], strides = [1, 1]} : vector<9x512xf32> to vector<1x512xf32>
    %83 = vector.broadcast %82 : vector<1x512xf32> to vector<8x512xf32>
    %84 = arith.mulf %81, %83 : vector<8x512xf32>
    %85 = tpu.concatenate %56, %60, %64, %68, %51, %72, %76, %80, %84 in 0 : vector<8x512xf32>, vector<8x512xf32>, vector<8x512xf32>, vector<8x512xf32>, vector<8x512xf32>, vector<8x512xf32>, vector<8x512xf32>, vector<8x512xf32>, vector<8x512xf32> -> vector<72x512xf32>
    %c0_23 = arith.constant 0 : index
    %c0_24 = arith.constant 0 : index
    %86 = vector.load %arg7[%c0_23, %c0_24] : memref<4x72xf32, #tpu.memory_space<vmem>>, vector<4x72xf32>
    %cst_25 = arith.constant dense<0.000000e+00> : vector<4x512xf32>
    %87 = tpu.matmul %86, %85, %cst_25 {dimension_numbers = #tpu.dot_dimension_numbers<[1], [0], [0], [1], [0, 0, 1, 1], [], []>} : vector<4x72xf32>, vector<72x512xf32>, vector<4x512xf32> -> vector<4x512xf32>
    %88 = vector.broadcast %52 : vector<4x1xf32> to vector<4x512xf32>
    %89 = arith.addf %87, %88 : vector<4x512xf32>
    %90 = vector.extract_strided_slice %0 {offsets = [0, 0], sizes = [4, 512], strides = [1, 1]} : vector<8x512xf32> to vector<4x512xf32>
    %91 = arith.addf %89, %90 : vector<4x512xf32>
    %c0_26 = arith.constant 0 : index
    %c0_27 = arith.constant 0 : index
    %92 = vector.load %arg9[%c0_26, %c0_27] : memref<4x512xf32, #tpu.memory_space<vmem>>, vector<4x512xf32>
    tpu.vector_store %arg9[%c0_26, %c0_27], %91 {strides = array<i32>} : memref<4x512xf32, #tpu.memory_space<vmem>>, vector<4x512xf32>,
    return
  }
  func.func @transform_0(%arg0: i32) -> (i32, i32) {
    %c0_i32 = arith.constant 0 : i32
    %c0_i32_0 = arith.constant 0 : i32
    return %c0_i32, %arg0 : i32, i32
  }
  func.func @transform_1(%arg0: i32) -> (i32, i32) {
    %c0_i32 = arith.constant 0 : i32
    %c0_i32_0 = arith.constant 0 : i32
    %c0_i32_1 = arith.constant 0 : i32
    return %c0_i32, %c0_i32_0 : i32, i32
  }
  func.func @transform_2(%arg0: i32) -> (i32, i32) {
    %c0_i32 = arith.constant 0 : i32
    %c0_i32_0 = arith.constant 0 : i32
    %c0_i32_1 = arith.constant 0 : i32
    return %c0_i32, %c0_i32_0 : i32, i32
  }
  func.func @transform_3(%arg0: i32) -> (i32, i32) {
    %c0_i32 = arith.constant 0 : i32
    %c0_i32_0 = arith.constant 0 : i32
    %c0_i32_1 = arith.constant 0 : i32
    return %c0_i32, %c0_i32_0 : i32, i32
  }
  func.func @transform_4(%arg0: i32) -> (i32, i32) {
    %c0_i32 = arith.constant 0 : i32
    %c0_i32_0 = arith.constant 0 : i32
    %c0_i32_1 = arith.constant 0 : i32
    return %c0_i32, %c0_i32_0 : i32, i32
  }
  func.func @transform_5(%arg0: i32) -> (i32, i32) {
    %c0_i32 = arith.constant 0 : i32
    %c0_i32_0 = arith.constant 0 : i32
    %c0_i32_1 = arith.constant 0 : i32
    return %c0_i32, %c0_i32_0 : i32, i32
  }
  func.func @transform_6(%arg0: i32) -> (i32, i32) {
    %c0_i32 = arith.constant 0 : i32
    %c0_i32_0 = arith.constant 0 : i32
    %c0_i32_1 = arith.constant 0 : i32
    return %c0_i32, %c0_i32_0 : i32, i32
  }
  func.func @transform_7(%arg0: i32) -> (i32, i32) {
    %c0_i32 = arith.constant 0 : i32
    %c0_i32_0 = arith.constant 0 : i32
    %c0_i32_1 = arith.constant 0 : i32
    return %c0_i32, %c0_i32_0 : i32, i32
  }
  func.func @transform_8(%arg0: i32) -> (i32, i32) {
    %c0_i32 = arith.constant 0 : i32
    %c0_i32_0 = arith.constant 0 : i32
    return %c0_i32, %arg0 : i32, i32
  }
}

</mosaic_0001>

<llo_original>
// kernel: tpu_custom_call.1
$region0: #{tpu_custom_call.1}
  #allocation0 [shape = 'u32[]', space=smem, size = 0x4, offset = 0x4, fixed_abs, tag = 'smem constant byte address 0x4 - core index']
  #allocation1 [shape = 'u32[144,128]{1,0:T(1,128)}', space=vmem, size = 0x12000, scoped, tag = 'internal scratch']
  %s0 = inlined_call_operand.hbm [shape: f32[8,512], index: 0, kind: input, shape index: {}]
  %s1 = inlined_call_operand.hbm [shape: f32[9,512], index: 1, kind: input, shape index: {}]
  %s2 = inlined_call_operand.vmem [shape: f32[8,1], index: 2, kind: input, shape index: {}]
  %s3 = inlined_call_operand.vmem [shape: f32[8,72], index: 3, kind: input, shape index: {}]
  %s4 = inlined_call_operand.vmem [shape: f32[8,1], index: 4, kind: input, shape index: {}]
  %s5 = inlined_call_operand.vmem [shape: f32[8,1], index: 5, kind: input, shape index: {}]
  %s6 = inlined_call_operand.vmem [shape: f32[4,72], index: 6, kind: input, shape index: {}]
  %s7 = inlined_call_operand.vmem [shape: f32[4,1], index: 7, kind: input, shape index: {}]
  %s8 = inlined_call_operand.hbm [shape: f32[4,512], index: 8, kind: output, shape index: {}]
  %s9 = sld [smem:[#allocation0]]
  $region50: #{tpu_custom_call.1} parent=0
    _
  %s11 = ssub.s32 1, %s9
  %s12 = scalar_select 0, %s11, %s9
  $region1: #{tpu_custom_call.1} parent=0
    #allocation2 [shape = 'u8[16384]{0}', space=vmem, size = 0x4000, scoped, tag = 'input window, operand 0, single buffered']
    #allocation3 [shape = 's32[1]{0}', space=sflag, size = 0x4, scoped, tag = 'scoped memory for tpu_custom_call.1']
    #allocation4 [shape = 's32[1]{0}', space=sflag, size = 0x4, scoped, tag = 'scoped memory for tpu_custom_call.1']
    #allocation5 [shape = 'u8[32768]{0}', space=vmem, size = 0x8000, scoped, tag = 'input window, operand 1, single buffered']
    #allocation6 [shape = 's32[1]{0}', space=sflag, size = 0x4, scoped, tag = 'scoped memory for tpu_custom_call.1']
    #allocation7 [shape = 'u8[8192]{0}', space=vmem, size = 0x2000, scoped, tag = 'output window, operand 0, single buffered']
    %13 = vsyncpa [#allocation3], 0
    %14 = vsyncpa [#allocation6], 0
    %15 = vsyncpa [#allocation4], 0
    // Predicated region
    $region2: #{tpu_custom_call.1} parent=1 // pred_check
      _
    $region3: #{tpu_custom_call.1} parent=1 // pred_check_branch
      %17 = sbr.rel (0) target = $region5
    $region4: #{tpu_custom_call.1} parent=1 // pred_region
      %s19 = ssub.s32 512, 512
      %20 = vsyncadd [#allocation3], %s19
      %s22 = sshll.u32 [#allocation2], 4
      %s23 = int_to_ptr.vmem [resolvable:$true] %s22
      %25 = dma.hbm_to_vmem [thread:$0]  %s0, 512, %s23, [#allocation3]
    $region5: #{tpu_custom_call.1} parent=1 // pred_fallthru
      _
    // Predicated region
    $region6: #{tpu_custom_call.1} parent=1 // pred_check
      _
    $region7: #{tpu_custom_call.1} parent=1 // pred_check_branch
      %27 = sbr.rel (0) target = $region9
    $region8: #{tpu_custom_call.1} parent=1 // pred_region
      %s29 = ssub.s32 1024, 1024
      %30 = vsyncadd [#allocation6], %s29
      %s31 = sshll.u32 [#allocation5], 4
      %s32 = int_to_ptr.vmem [resolvable:$true] %s31
      %37 = dma.hbm_to_vmem [thread:$0]  %s1, 1024, %s32, [#allocation6], 512, 512, 32
    $region9: #{tpu_custom_call.1} parent=1 // pred_fallthru
      _
    // Predicated region
    $region10: #{tpu_custom_call.1} parent=1 // pred_check
      _
    $region11: #{tpu_custom_call.1} parent=1 // pred_check_branch
      %39 = sbr.rel (0) target = $region13
    $region12: #{tpu_custom_call.1} parent=1 // pred_region
      _
    $region13: #{tpu_custom_call.1} parent=1 // pred_fallthru
      _
    // Predicated region
    $region14: #{tpu_custom_call.1} parent=1 // pred_check
      _
    $region15: #{tpu_custom_call.1} parent=1 // pred_check_branch
      %41 = sbr.rel (0) target = $region17
    $region16: #{tpu_custom_call.1} parent=1 // pred_region
      _
    $region17: #{tpu_custom_call.1} parent=1 // pred_fallthru
      _
    // Predicated region
    $region18: #{tpu_custom_call.1} parent=1 // pred_check
      _
    $region19: #{tpu_custom_call.1} parent=1 // pred_check_branch
      %43 = sbr.rel (0) target = $region21
    $region20: #{tpu_custom_call.1} parent=1 // pred_region
      _
    $region21: #{tpu_custom_call.1} parent=1 // pred_fallthru
      _
    // Predicated region
    $region22: #{tpu_custom_call.1} parent=1 // pred_check
      _
    $region23: #{tpu_custom_call.1} parent=1 // pred_check_branch
      %45 = sbr.rel (0) target = $region25
    $region24: #{tpu_custom_call.1} parent=1 // pred_region
      _
    $region25: #{tpu_custom_call.1} parent=1 // pred_fallthru
      _
    // Predicated region
    $region26: #{tpu_custom_call.1} parent=1 // pred_check
      _
    $region27: #{tpu_custom_call.1} parent=1 // pred_check_branch
      %47 = sbr.rel (0) target = $region29
    $region28: #{tpu_custom_call.1} parent=1 // pred_region
      _
    $region29: #{tpu_custom_call.1} parent=1 // pred_fallthru
      _
    // Predicated region
    $region30: #{tpu_custom_call.1} parent=1 // pred_check
      _
    $region31: #{tpu_custom_call.1} parent=1 // pred_check_branch
      %49 = sbr.rel (0) target = $region33
    $region32: #{tpu_custom_call.1} parent=1 // pred_region
      _
    $region33: #{tpu_custom_call.1} parent=1 // pred_fallthru
      _
    // Predicated region
    $region34: #{tpu_custom_call.1} parent=1 // pred_check
      _
    $region35: #{tpu_custom_call.1} parent=1 // pred_check_branch
      %51 = sbr.rel (0) target = $region37
    $region36: #{tpu_custom_call.1} parent=1 // pred_region
      %52 = dma.done [#allocation3], 512
    $region37: #{tpu_custom_call.1} parent=1 // pred_fallthru
      _
    // Predicated region
    $region38: #{tpu_custom_call.1} parent=1 // pred_check
      _
    $region39: #{tpu_custom_call.1} parent=1 // pred_check_branch
      %54 = sbr.rel (0) target = $region41
    $region40: #{tpu_custom_call.1} parent=1 // pred_region
      %55 = dma.done [#allocation6], 1024
    $region41: #{tpu_custom_call.1} parent=1 // pred_fallthru
      _
    %v56 = vld [vmem:[#allocation2] sm:$0xff]
    %v57 = vld [vmem:[#allocation2 + $0x8] sm:$0xff]
    %v58 = vld [vmem:[#allocation2 + $0x10] sm:$0xff]
    %v59 = vld [vmem:[#allocation2 + $0x18] sm:$0xff]
    %v60 = vld [vmem:[#allocation5] sm:$0xff]
    %v61 = vld [vmem:[#allocation5 + $0x8] sm:$0xff]
    %v62 = vld [vmem:[#allocation5 + $0x10] sm:$0xff]
    %v63 = vld [vmem:[#allocation5 + $0x18] sm:$0xff]
    %v64 = vld [vmem:[#allocation5 + $0x20] sm:$0x1]
    %v65 = vld [vmem:[#allocation5 + $0x28] sm:$0x1]
    %v66 = vld [vmem:[#allocation5 + $0x30] sm:$0x1]
    %v67 = vld [vmem:[#allocation5 + $0x38] sm:$0x1]
    %vm68 = vcmp.gt.f32.partialorder %v56, 0.0
    %vm69 = vcmp.gt.f32.partialorder %v57, 0.0
    %vm70 = vcmp.gt.f32.partialorder %v58, 0.0
    %vm71 = vcmp.gt.f32.partialorder %v59, 0.0
    %v72 = vld [vmem:[%s2] sm:$0xff]
    %74 = vset.pattern.permute.xlu0 0
    %75 = vperm.xlu0 %74, %v72
    %v76 = vpop.permute.xlu0 %75
    %v78 = vmul.f32 %v76, %v56
    %v79 = vmul.f32 %v76, %v57
    %v80 = vmul.f32 %v76, %v58
    %v81 = vmul.f32 %v76, %v59
    %v82 = vsel %vm68, %v56, %v78
    %v83 = vsel %vm69, %v57, %v79
    %v84 = vsel %vm70, %v58, %v80
    %v85 = vsel %vm71, %v59, %v81
    %v86 = vld [vmem:[%s4] sm:$0xff]
    %87 = vrot.lane.b32.xlu0 %v82, 17
    %v88 = vpop.permute.xlu0 %87
    %89 = vrot.lane.b32.xlu0 %v83, 17
    %v90 = vpop.permute.xlu0 %89
    %91 = vrot.lane.b32.xlu0 %v84, 17
    %v92 = vpop.permute.xlu0 %91
    %93 = vrot.lane.b32.xlu0 %v85, 17
    %v94 = vpop.permute.xlu0 %93
    %v95 = vlaneseq
    %v96 = vand.u32 %v95, 127
    %vm97 = vcmp.lt.s32.totalorder %v96, 17
    %v98 = vsel %vm97, %v92, %v94
    %v99 = vsel %vm97, %v90, %v92
    %v100 = vsel %vm97, %v88, %v90
    %v101 = vsel %vm97, %v94, %v88
    %v102 = vlaneseq
    %v103 = vshrl.u32 %v102, 7
    %v104 = vsub.s32 0, %v103
    %v105 = vrot.slane %v60, %v104
    %v106 = vlaneseq
    %v107 = vshrl.u32 %v106, 7
    %v108 = vsub.s32 0, %v107
    %v109 = vrot.slane %v61, %v108
    %v110 = vlaneseq
    %v111 = vshrl.u32 %v110, 7
    %v112 = vsub.s32 0, %v111
    %v113 = vrot.slane %v62, %v112
    %v114 = vlaneseq
    %v115 = vshrl.u32 %v114, 7
    %v116 = vsub.s32 0, %v115
    %v117 = vrot.slane %v63, %v116
    %v118 = vmul.f32 %v101, %v105
    %v119 = vmul.f32 %v100, %v109
    %v120 = vmul.f32 %v99, %v113
    %v121 = vmul.f32 %v98, %v117
    %122 = vrot.lane.b32.xlu0 %v82, 16
    %v123 = vpop.permute.xlu0 %122
    %124 = vrot.lane.b32.xlu0 %v83, 16
    %v125 = vpop.permute.xlu0 %124
    %126 = vrot.lane.b32.xlu0 %v84, 16
    %v127 = vpop.permute.xlu0 %126
    %128 = vrot.lane.b32.xlu0 %v85, 16
    %v129 = vpop.permute.xlu0 %128
    %vm130 = vcmp.lt.s32.totalorder %v96, 16
    %v131 = vsel %vm130, %v127, %v129
    %v132 = vsel %vm130, %v125, %v127
    %v133 = vsel %vm130, %v123, %v125
    %v134 = vsel %vm130, %v129, %v123
    %v135 = vlaneseq
    %v136 = vshrl.u32 %v135, 7
    %v137 = vsub.s32 1, %v136
    %v138 = vrot.slane %v60, %v137
    %v139 = vlaneseq
    %v140 = vshrl.u32 %v139, 7
    %v141 = vsub.s32 1, %v140
    %v142 = vrot.slane %v61, %v141
    %v143 = vlaneseq
    %v144 = vshrl.u32 %v143, 7
    %v145 = vsub.s32 1, %v144
    %v146 = vrot.slane %v62, %v145
    %v147 = vlaneseq
    %v148 = vshrl.u32 %v147, 7
    %v149 = vsub.s32 1, %v148
    %v150 = vrot.slane %v63, %v149
    %v151 = vmul.f32 %v134, %v138
    %v152 = vmul.f32 %v133, %v142
    %v153 = vmul.f32 %v132, %v146
    %v154 = vmul.f32 %v131, %v150
    %155 = vrot.lane.b32.xlu0 %v82, 15
    %v156 = vpop.permute.xlu0 %155
    %157 = vrot.lane.b32.xlu0 %v83, 15
    %v158 = vpop.permute.xlu0 %157
    %159 = vrot.lane.b32.xlu0 %v84, 15
    %v160 = vpop.permute.xlu0 %159
    %161 = vrot.lane.b32.xlu0 %v85, 15
    %v162 = vpop.permute.xlu0 %161
    %vm163 = vcmp.lt.s32.totalorder %v96, 15
    %v164 = vsel %vm163, %v160, %v162
    %v165 = vsel %vm163, %v158, %v160
    %v166 = vsel %vm163, %v156, %v158
    %v167 = vsel %vm163, %v162, %v156
    %v168 = vlaneseq
    %v169 = vshrl.u32 %v168, 7
    %v170 = vsub.s32 2, %v169
    %v171 = vrot.slane %v60, %v170
    %v172 = vlaneseq
    %v173 = vshrl.u32 %v172, 7
    %v174 = vsub.s32 2, %v173
    %v175 = vrot.slane %v61, %v174
    %v176 = vlaneseq
    %v177 = vshrl.u32 %v176, 7
    %v178 = vsub.s32 2, %v177
    %v179 = vrot.slane %v62, %v178
    %v180 = vlaneseq
    %v181 = vshrl.u32 %v180, 7
    %v182 = vsub.s32 2, %v181
    %v183 = vrot.slane %v63, %v182
    %v184 = vmul.f32 %v167, %v171
    %v185 = vmul.f32 %v166, %v175
    %v186 = vmul.f32 %v165, %v179
    %v187 = vmul.f32 %v164, %v183
    %188 = vrot.lane.b32.xlu0 %v82, 1
    %v189 = vpop.permute.xlu0 %188
    %190 = vrot.lane.b32.xlu0 %v83, 1
    %v191 = vpop.permute.xlu0 %190
    %192 = vrot.lane.b32.xlu0 %v84, 1
    %v193 = vpop.permute.xlu0 %192
    %194 = vrot.lane.b32.xlu0 %v85, 1
    %v195 = vpop.permute.xlu0 %194
    %vm196 = vcmp.lt.s32.totalorder %v96, 1
    %v197 = vsel %vm196, %v193, %v195
    %v198 = vsel %vm196, %v191, %v193
    %v199 = vsel %vm196, %v189, %v191
    %v200 = vsel %vm196, %v195, %v189
    %v201 = vlaneseq
    %v202 = vshrl.u32 %v201, 7
    %v203 = vsub.s32 3, %v202
    %v204 = vrot.slane %v60, %v203
    %v205 = vlaneseq
    %v206 = vshrl.u32 %v205, 7
    %v207 = vsub.s32 3, %v206
    %v208 = vrot.slane %v61, %v207
    %v209 = vlaneseq
    %v210 = vshrl.u32 %v209, 7
    %v211 = vsub.s32 3, %v210
    %v212 = vrot.slane %v62, %v211
    %v213 = vlaneseq
    %v214 = vshrl.u32 %v213, 7
    %v215 = vsub.s32 3, %v214
    %v216 = vrot.slane %v63, %v215
    %v217 = vmul.f32 %v200, %v204
    %v218 = vmul.f32 %v199, %v208
    %v219 = vmul.f32 %v198, %v212
    %v220 = vmul.f32 %v197, %v216
    %221 = vrot.lane.b32.xlu0 %v82, 127
    %v222 = vpop.permute.xlu0 %221
    %223 = vrot.lane.b32.xlu0 %v83, 127
    %v224 = vpop.permute.xlu0 %223
    %225 = vrot.lane.b32.xlu0 %v84, 127
    %v226 = vpop.permute.xlu0 %225
    %227 = vrot.lane.b32.xlu0 %v85, 127
    %v228 = vpop.permute.xlu0 %227
    %vm229 = vcmp.lt.s32.totalorder %v96, 127
    %v230 = vsel %vm229, %v226, %v228
    %v231 = vsel %vm229, %v224, %v226
    %v232 = vsel %vm229, %v222, %v224
    %v233 = vsel %vm229, %v228, %v222
    %v234 = vlaneseq
    %v235 = vshrl.u32 %v234, 7
    %v236 = vsub.s32 5, %v235
    %v237 = vrot.slane %v60, %v236
    %v238 = vlaneseq
    %v239 = vshrl.u32 %v238, 7
    %v240 = vsub.s32 5, %v239
    %v241 = vrot.slane %v61, %v240
    %v242 = vlaneseq
    %v243 = vshrl.u32 %v242, 7
    %v244 = vsub.s32 5, %v243
    %v245 = vrot.slane %v62, %v244
    %v246 = vlaneseq
    %v247 = vshrl.u32 %v246, 7
    %v248 = vsub.s32 5, %v247
    %v249 = vrot.slane %v63, %v248
    %v250 = vmul.f32 %v232, %v237
    %v251 = vmul.f32 %v231, %v241
    %v252 = vmul.f32 %v230, %v245
    %v253 = vmul.f32 %v233, %v249
    %254 = vrot.lane.b32.xlu0 %v82, 113
    %v255 = vpop.permute.xlu0 %254
    %256 = vrot.lane.b32.xlu0 %v83, 113
    %v257 = vpop.permute.xlu0 %256
    %258 = vrot.lane.b32.xlu0 %v84, 113
    %v259 = vpop.permute.xlu0 %258
    %260 = vrot.lane.b32.xlu0 %v85, 113
    %v261 = vpop.permute.xlu0 %260
    %vm262 = vcmp.lt.s32.totalorder %v96, 113
    %v263 = vsel %vm262, %v259, %v261
    %v264 = vsel %vm262, %v257, %v259
    %v265 = vsel %vm262, %v255, %v257
    %v266 = vsel %vm262, %v261, %v255
    %v267 = vlaneseq
    %v268 = vshrl.u32 %v267, 7
    %v269 = vsub.s32 6, %v268
    %v270 = vrot.slane %v60, %v269
    %v271 = vlaneseq
    %v272 = vshrl.u32 %v271, 7
    %v273 = vsub.s32 6, %v272
    %v274 = vrot.slane %v61, %v273
    %v275 = vlaneseq
    %v276 = vshrl.u32 %v275, 7
    %v277 = vsub.s32 6, %v276
    %v278 = vrot.slane %v62, %v277
    %v279 = vlaneseq
    %v280 = vshrl.u32 %v279, 7
    %v281 = vsub.s32 6, %v280
    %v282 = vrot.slane %v63, %v281
    %v283 = vmul.f32 %v265, %v270
    %v284 = vmul.f32 %v264, %v274
    %v285 = vmul.f32 %v263, %v278
    %v286 = vmul.f32 %v266, %v282
    %287 = vrot.lane.b32.xlu0 %v82, 112
    %v288 = vpop.permute.xlu0 %287
    %289 = vrot.lane.b32.xlu0 %v83, 112
    %v290 = vpop.permute.xlu0 %289
    %291 = vrot.lane.b32.xlu0 %v84, 112
    %v292 = vpop.permute.xlu0 %291
    %293 = vrot.lane.b32.xlu0 %v85, 112
    %v294 = vpop.permute.xlu0 %293
    %vm295 = vcmp.lt.s32.totalorder %v96, 112
    %v296 = vsel %vm295, %v292, %v294
    %v297 = vsel %vm295, %v290, %v292
    %v298 = vsel %vm295, %v288, %v290
    %v299 = vsel %vm295, %v294, %v288
    %v300 = vlaneseq
    %v301 = vshrl.u32 %v300, 7
    %v302 = vsub.s32 7, %v301
    %v303 = vrot.slane %v60, %v302
    %v304 = vlaneseq
    %v305 = vshrl.u32 %v304, 7
    %v306 = vsub.s32 7, %v305
    %v307 = vrot.slane %v61, %v306
    %v308 = vlaneseq
    %v309 = vshrl.u32 %v308, 7
    %v310 = vsub.s32 7, %v309
    %v311 = vrot.slane %v62, %v310
    %v312 = vlaneseq
    %v313 = vshrl.u32 %v312, 7
    %v314 = vsub.s32 7, %v313
    %v315 = vrot.slane %v63, %v314
    %v316 = vmul.f32 %v298, %v303
    %v317 = vmul.f32 %v297, %v307
    %v318 = vmul.f32 %v296, %v311
    %v319 = vmul.f32 %v299, %v315
    %320 = vrot.lane.b32.xlu0 %v82, 111
    %v321 = vpop.permute.xlu0 %320
    %322 = vrot.lane.b32.xlu0 %v83, 111
    %v323 = vpop.permute.xlu0 %322
    %324 = vrot.lane.b32.xlu0 %v84, 111
    %v325 = vpop.permute.xlu0 %324
    %326 = vrot.lane.b32.xlu0 %v85, 111
    %v327 = vpop.permute.xlu0 %326
    %vm328 = vcmp.lt.s32.totalorder %v96, 111
    %v329 = vsel %vm328, %v325, %v327
    %v330 = vsel %vm328, %v323, %v325
    %v331 = vsel %vm328, %v321, %v323
    %v332 = vsel %vm328, %v327, %v321
    %v333 = vlaneseq
    %v334 = vshrl.u32 %v333, 7
    %v335 = vsub.s32 0, %v334
    %v336 = vrot.slane %v64, %v335
    %v337 = vlaneseq
    %v338 = vshrl.u32 %v337, 7
    %v339 = vsub.s32 0, %v338
    %v340 = vrot.slane %v65, %v339
    %v341 = vlaneseq
    %v342 = vshrl.u32 %v341, 7
    %v343 = vsub.s32 0, %v342
    %v344 = vrot.slane %v66, %v343
    %v345 = vlaneseq
    %v346 = vshrl.u32 %v345, 7
    %v347 = vsub.s32 0, %v346
    %v348 = vrot.slane %v67, %v347
    %v349 = vmul.f32 %v331, %v336
    %v350 = vmul.f32 %v330, %v340
    %v351 = vmul.f32 %v329, %v344
    %v352 = vmul.f32 %v332, %v348
    %v353 = vld [vmem:[%s3] sm:$0xff]
    %355 = vset.pattern.permute.xlu0 0
    %356 = vperm.xlu0 %355, %v86
    %v357 = vpop.permute.xlu0 %356
    %vm359 = vcmask 588800
    %v361 = vsel %vm359, %v353, 0
    %363 = vmatprep.subr.mxu0 %v119
    %364 = vmatpush1.msra.mxu0 %v118
    %365 = vmatprep.subr.mxu0 %v152
    %366 = vmatpush1.msra.mxu0 %v151
    %367 = vmatprep.subr.mxu0 %v185
    %368 = vmatpush1.msra.mxu0 %v184
    %369 = vmatprep.subr.mxu0 %v218
    %370 = vmatpush1.msra.mxu0 %v217
    %371 = vmatprep.subr.mxu0 %v83
    %372 = vmatpush1.msra.mxu0 %v82
    %373 = vmatprep.subr.mxu0 %v251
    %374 = vmatpush1.msra.mxu0 %v250
    %375 = vmatprep.subr.mxu0 %v284
    %376 = vmatpush1.msra.mxu0 %v283
    %377 = vmatprep.subr.mxu0 %v317
    %378 = vmatpush1.msra.mxu0 %v316
    %379 = vmatprep.subr.mxu0 %v350
    %380 = vmatpush1.msra.mxu0 %v349
    %381 = vmatprep.subr.mxu0 0.0
    %382 = vmatpush1.msra.mxu0 0.0
    %383 = vmatprep.subr.mxu0 0.0
    %384 = vmatpush1.msra.mxu0 0.0
    %385 = vmatprep.subr.mxu0 0.0
    %386 = vmatpush1.msra.mxu0 0.0
    %387 = vmatprep.subr.mxu0 0.0
    %388 = vmatpush1.msra.mxu0 0.0
    %389 = vmatprep.subr.mxu0 0.0
    %390 = vmatpush1.msra.mxu0 0.0
    %391 = vmatprep.subr.mxu0 0.0
    %392 = vmatpush1.msra.mxu0 0.0
    %393 = vmatprep.subr.mxu0 0.0
    %394 = vmatpush1.msra.mxu0 0.0
    %395 = vmatprep.subr.mxu0 0.0
    %396 = vmatpush1.msra.mxu0 0.0
    %397 = vmatprep.subr.mxu0 0.0
    %398 = vmatpush1.msra.mxu0 0.0
    %399 = vmatprep.subr.mxu0 0.0
    %400 = vmatpush1.msra.mxu0 0.0
    %401 = vmatprep.subr.mxu0 0.0
    %402 = vmatpush1.msra.mxu0 0.0
    %403 = vmatprep.subr.mxu0 0.0
    %404 = vmatpush1.msra.mxu0 0.0
    %405 = vmatprep.subr.mxu0 0.0
    %406 = vmatpush1.msra.mxu0 0.0
    %407 = vmatprep.subr.mxu0 0.0
    %408 = vmatpush1.msra.mxu0 0.0
    %409 = vmatprep.subr.mxu0 0.0
    %410 = vmatpush1.msra.mxu0 0.0
    %411 = vmatprep.subr.mxu0 0.0
    %412 = vmatpush1.msra.mxu0 0.0
    %413 = vmatprep.subr.mxu0 0.0
    %414 = vmatpush1.msra.mxu0 0.0
    %415 = vmatprep.subr.mxu0 0.0
    %416 = vmatpush1.msra.mxu0 0.0
    %417 = vmatprep.subr.mxu0 0.0
    %418 = vmatpush1.msra.mxu0 0.0
    %419 = vmatprep.subr.mxu0 0.0
    %420 = vmatpush1.msra.mxu0 0.0
    %421 = vmatprep.subr.mxu0 0.0
    %422 = vmatpush1.msra.mxu0 0.0
    %423 = vmatprep.subr.mxu0 0.0
    %424 = vmatpush1.msra.mxu0 0.0
    %425 = vmatprep.subr.mxu0 0.0
    %426 = vmatpush1.msra.mxu0 0.0
    %427 = vmatprep.mubr.f32.mxu0 0.0
    %428 = vmatmul.mubr.f32.gmra.mrb[0].mxu0 %v361
    %v429 = vpop.f32.mrb[0].mxu0
    %v430 = vadd.f32 %v357, %v429
    %v431 = vpop.f32.mrb[0].mxu0
    %v432 = vadd.f32 %v357, %v431
    %433 = vdwg.mxu0
    %434 = vmatprep.subr.mxu0 %v121
    %435 = vmatpush1.msra.mxu0 %v120
    %436 = vmatprep.subr.mxu0 %v154
    %437 = vmatpush1.msra.mxu0 %v153
    %438 = vmatprep.subr.mxu0 %v187
    %439 = vmatpush1.msra.mxu0 %v186
    %440 = vmatprep.subr.mxu0 %v220
    %441 = vmatpush1.msra.mxu0 %v219
    %442 = vmatprep.subr.mxu0 %v85
    %443 = vmatpush1.msra.mxu0 %v84
    %444 = vmatprep.subr.mxu0 %v253
    %445 = vmatpush1.msra.mxu0 %v252
    %446 = vmatprep.subr.mxu0 %v286
    %447 = vmatpush1.msra.mxu0 %v285
    %448 = vmatprep.subr.mxu0 %v319
    %449 = vmatpush1.msra.mxu0 %v318
    %450 = vmatprep.subr.mxu0 %v352
    %451 = vmatpush1.msra.mxu0 %v351
    %452 = vmatprep.subr.mxu0 0.0
    %453 = vmatpush1.msra.mxu0 0.0
    %454 = vmatprep.subr.mxu0 0.0
    %455 = vmatpush1.msra.mxu0 0.0
    %456 = vmatprep.subr.mxu0 0.0
    %457 = vmatpush1.msra.mxu0 0.0
    %458 = vmatprep.subr.mxu0 0.0
    %459 = vmatpush1.msra.mxu0 0.0
    %460 = vmatprep.subr.mxu0 0.0
    %461 = vmatpush1.msra.mxu0 0.0
    %462 = vmatprep.subr.mxu0 0.0
    %463 = vmatpush1.msra.mxu0 0.0
    %464 = vmatprep.subr.mxu0 0.0
    %465 = vmatpush1.msra.mxu0 0.0
    %466 = vmatprep.subr.mxu0 0.0
    %467 = vmatpush1.msra.mxu0 0.0
    %468 = vmatprep.subr.mxu0 0.0
    %469 = vmatpush1.msra.mxu0 0.0
    %470 = vmatprep.subr.mxu0 0.0
    %471 = vmatpush1.msra.mxu0 0.0
    %472 = vmatprep.subr.mxu0 0.0
    %473 = vmatpush1.msra.mxu0 0.0
    %474 = vmatprep.subr.mxu0 0.0
    %475 = vmatpush1.msra.mxu0 0.0
    %476 = vmatprep.subr.mxu0 0.0
    %477 = vmatpush1.msra.mxu0 0.0
    %478 = vmatprep.subr.mxu0 0.0
    %479 = vmatpush1.msra.mxu0 0.0
    %480 = vmatprep.subr.mxu0 0.0
    %481 = vmatpush1.msra.mxu0 0.0
    %482 = vmatprep.subr.mxu0 0.0
    %483 = vmatpush1.msra.mxu0 0.0
    %484 = vmatprep.subr.mxu0 0.0
    %485 = vmatpush1.msra.mxu0 0.0
    %486 = vmatprep.subr.mxu0 0.0
    %487 = vmatpush1.msra.mxu0 0.0
    %488 = vmatprep.subr.mxu0 0.0
    %489 = vmatpush1.msra.mxu0 0.0
    %490 = vmatprep.subr.mxu0 0.0
    %491 = vmatpush1.msra.mxu0 0.0
    %492 = vmatprep.subr.mxu0 0.0
    %493 = vmatpush1.msra.mxu0 0.0
    %494 = vmatprep.subr.mxu0 0.0
    %495 = vmatpush1.msra.mxu0 0.0
    %496 = vmatprep.subr.mxu0 0.0
    %497 = vmatpush1.msra.mxu0 0.0
    %498 = vmatprep.mubr.f32.mxu0 0.0
    %499 = vmatmul.mubr.f32.gmra.mrb[0].mxu0 %v361
    %v500 = vpop.f32.mrb[0].mxu0
    %v501 = vadd.f32 %v357, %v500
    %v502 = vpop.f32.mrb[0].mxu0
    %v503 = vadd.f32 %v357, %v502
    %504 = vdwg.mxu0
    %vm505 = vcmp.gt.f32.partialorder %v430, 0.0
    %vm506 = vcmp.gt.f32.partialorder %v432, 0.0
    %vm507 = vcmp.gt.f32.partialorder %v501, 0.0
    %vm508 = vcmp.gt.f32.partialorder %v503, 0.0
    %v509 = vld [vmem:[%s5] sm:$0xff]
    %511 = vset.pattern.permute.xlu0 0
    %512 = vperm.xlu0 %511, %v509
    %v513 = vpop.permute.xlu0 %512
    %v515 = vmul.f32 %v513, %v430
    %v516 = vmul.f32 %v513, %v432
    %v517 = vmul.f32 %v513, %v501
    %v518 = vmul.f32 %v513, %v503
    %v519 = vsel %vm505, %v430, %v515
    %v520 = vsel %vm506, %v432, %v516
    %v521 = vsel %vm507, %v501, %v517
    %v522 = vsel %vm508, %v503, %v518
    %v523 = vld [vmem:[%s7] sm:$0xf]
    %524 = vrot.lane.b32.xlu0 %v519, 17
    %v525 = vpop.permute.xlu0 %524
    %526 = vrot.lane.b32.xlu0 %v520, 17
    %v527 = vpop.permute.xlu0 %526
    %528 = vrot.lane.b32.xlu0 %v521, 17
    %v529 = vpop.permute.xlu0 %528
    %530 = vrot.lane.b32.xlu0 %v522, 17
    %v531 = vpop.permute.xlu0 %530
    %v532 = vsel %vm97, %v529, %v531
    %v533 = vsel %vm97, %v527, %v529
    %v534 = vsel %vm97, %v525, %v527
    %v535 = vsel %vm97, %v531, %v525
    %v536 = vmul.f32 %v535, %v105
    %v537 = vmul.f32 %v534, %v109
    %v538 = vmul.f32 %v533, %v113
    %v539 = vmul.f32 %v532, %v117
    %540 = vrot.lane.b32.xlu0 %v519, 16
    %v541 = vpop.permute.xlu0 %540
    %542 = vrot.lane.b32.xlu0 %v520, 16
    %v543 = vpop.permute.xlu0 %542
    %544 = vrot.lane.b32.xlu0 %v521, 16
    %v545 = vpop.permute.xlu0 %544
    %546 = vrot.lane.b32.xlu0 %v522, 16
    %v547 = vpop.permute.xlu0 %546
    %v548 = vsel %vm130, %v545, %v547
    %v549 = vsel %vm130, %v543, %v545
    %v550 = vsel %vm130, %v541, %v543
    %v551 = vsel %vm130, %v547, %v541
    %v552 = vmul.f32 %v551, %v138
    %v553 = vmul.f32 %v550, %v142
    %v554 = vmul.f32 %v549, %v146
    %v555 = vmul.f32 %v548, %v150
    %556 = vrot.lane.b32.xlu0 %v519, 15
    %v557 = vpop.permute.xlu0 %556
    %558 = vrot.lane.b32.xlu0 %v520, 15
    %v559 = vpop.permute.xlu0 %558
    %560 = vrot.lane.b32.xlu0 %v521, 15
    %v561 = vpop.permute.xlu0 %560
    %562 = vrot.lane.b32.xlu0 %v522, 15
    %v563 = vpop.permute.xlu0 %562
    %v564 = vsel %vm163, %v561, %v563
    %v565 = vsel %vm163, %v559, %v561
    %v566 = vsel %vm163, %v557, %v559
    %v567 = vsel %vm163, %v563, %v557
    %v568 = vmul.f32 %v567, %v171
    %v569 = vmul.f32 %v566, %v175
    %v570 = vmul.f32 %v565, %v179
    %v571 = vmul.f32 %v564, %v183
    %572 = vrot.lane.b32.xlu0 %v519, 1
    %v573 = vpop.permute.xlu0 %572
    %574 = vrot.lane.b32.xlu0 %v520, 1
    %v575 = vpop.permute.xlu0 %574
    %576 = vrot.lane.b32.xlu0 %v521, 1
    %v577 = vpop.permute.xlu0 %576
    %578 = vrot.lane.b32.xlu0 %v522, 1
    %v579 = vpop.permute.xlu0 %578
    %v580 = vsel %vm196, %v577, %v579
    %v581 = vsel %vm196, %v575, %v577
    %v582 = vsel %vm196, %v573, %v575
    %v583 = vsel %vm196, %v579, %v573
    %v584 = vmul.f32 %v583, %v204
    %v585 = vmul.f32 %v582, %v208
    %v586 = vmul.f32 %v581, %v212
    %v587 = vmul.f32 %v580, %v216
    %588 = vrot.lane.b32.xlu0 %v519, 127
    %v589 = vpop.permute.xlu0 %588
    %590 = vrot.lane.b32.xlu0 %v520, 127
    %v591 = vpop.permute.xlu0 %590
    %592 = vrot.lane.b32.xlu0 %v521, 127
    %v593 = vpop.permute.xlu0 %592
    %594 = vrot.lane.b32.xlu0 %v522, 127
    %v595 = vpop.permute.xlu0 %594
    %v596 = vsel %vm229, %v593, %v595
    %v597 = vsel %vm229, %v591, %v593
    %v598 = vsel %vm229, %v589, %v591
    %v599 = vsel %vm229, %v595, %v589
    %v600 = vmul.f32 %v598, %v237
    %v601 = vmul.f32 %v597, %v241
    %v602 = vmul.f32 %v596, %v245
    %v603 = vmul.f32 %v599, %v249
    %604 = vrot.lane.b32.xlu0 %v519, 113
    %v605 = vpop.permute.xlu0 %604
    %606 = vrot.lane.b32.xlu0 %v520, 113
    %v607 = vpop.permute.xlu0 %606
    %608 = vrot.lane.b32.xlu0 %v521, 113
    %v609 = vpop.permute.xlu0 %608
    %610 = vrot.lane.b32.xlu0 %v522, 113
    %v611 = vpop.permute.xlu0 %610
    %v612 = vsel %vm262, %v609, %v611
    %v613 = vsel %vm262, %v607, %v609
    %v614 = vsel %vm262, %v605, %v607
    %v615 = vsel %vm262, %v611, %v605
    %v616 = vmul.f32 %v614, %v270
    %v617 = vmul.f32 %v613, %v274
    %v618 = vmul.f32 %v612, %v278
    %v619 = vmul.f32 %v615, %v282
    %620 = vrot.lane.b32.xlu0 %v519, 112
    %v621 = vpop.permute.xlu0 %620
    %622 = vrot.lane.b32.xlu0 %v520, 112
    %v623 = vpop.permute.xlu0 %622
    %624 = vrot.lane.b32.xlu0 %v521, 112
    %v625 = vpop.permute.xlu0 %624
    %626 = vrot.lane.b32.xlu0 %v522, 112
    %v627 = vpop.permute.xlu0 %626
    %v628 = vsel %vm295, %v625, %v627
    %v629 = vsel %vm295, %v623, %v625
    %v630 = vsel %vm295, %v621, %v623
    %v631 = vsel %vm295, %v627, %v621
    %v632 = vmul.f32 %v630, %v303
    %v633 = vmul.f32 %v629, %v307
    %v634 = vmul.f32 %v628, %v311
    %v635 = vmul.f32 %v631, %v315
    %636 = vrot.lane.b32.xlu0 %v519, 111
    %v637 = vpop.permute.xlu0 %636
    %638 = vrot.lane.b32.xlu0 %v520, 111
    %v639 = vpop.permute.xlu0 %638
    %640 = vrot.lane.b32.xlu0 %v521, 111
    %v641 = vpop.permute.xlu0 %640
    %642 = vrot.lane.b32.xlu0 %v522, 111
    %v643 = vpop.permute.xlu0 %642
    %v644 = vsel %vm328, %v641, %v643
    %v645 = vsel %vm328, %v639, %v641
    %v646 = vsel %vm328, %v637, %v639
    %v647 = vsel %vm328, %v643, %v637
    %v648 = vmul.f32 %v646, %v336
    %v649 = vmul.f32 %v645, %v340
    %v650 = vmul.f32 %v644, %v344
    %v651 = vmul.f32 %v647, %v348
    %v652 = vld [vmem:[%s6] sm:$0xf]
    %654 = vset.pattern.permute.xlu0 0
    %655 = vperm.xlu0 %654, %v523
    %v656 = vpop.permute.xlu0 %655
    %v659 = vsel %vm359, %v652, 0
    %661 = vmatprep.subr.mxu0 %v537
    %662 = vmatpush1.msra.mxu0 %v536
    %663 = vmatprep.subr.mxu0 %v553
    %664 = vmatpush1.msra.mxu0 %v552
    %665 = vmatprep.subr.mxu0 %v569
    %666 = vmatpush1.msra.mxu0 %v568
    %667 = vmatprep.subr.mxu0 %v585
    %668 = vmatpush1.msra.mxu0 %v584
    %669 = vmatprep.subr.mxu0 %v520
    %670 = vmatpush1.msra.mxu0 %v519
    %671 = vmatprep.subr.mxu0 %v601
    %672 = vmatpush1.msra.mxu0 %v600
    %673 = vmatprep.subr.mxu0 %v617
    %674 = vmatpush1.msra.mxu0 %v616
    %675 = vmatprep.subr.mxu0 %v633
    %676 = vmatpush1.msra.mxu0 %v632
    %677 = vmatprep.subr.mxu0 %v649
    %678 = vmatpush1.msra.mxu0 %v648
    %679 = vmatprep.subr.mxu0 0.0
    %680 = vmatpush1.msra.mxu0 0.0
    %681 = vmatprep.subr.mxu0 0.0
    %682 = vmatpush1.msra.mxu0 0.0
    %683 = vmatprep.subr.mxu0 0.0
    %684 = vmatpush1.msra.mxu0 0.0
    %685 = vmatprep.subr.mxu0 0.0
    %686 = vmatpush1.msra.mxu0 0.0
    %687 = vmatprep.subr.mxu0 0.0
    %688 = vmatpush1.msra.mxu0 0.0
    %689 = vmatprep.subr.mxu0 0.0
    %690 = vmatpush1.msra.mxu0 0.0
    %691 = vmatprep.subr.mxu0 0.0
    %692 = vmatpush1.msra.mxu0 0.0
    %693 = vmatprep.subr.mxu0 0.0
    %694 = vmatpush1.msra.mxu0 0.0
    %695 = vmatprep.subr.mxu0 0.0
    %696 = vmatpush1.msra.mxu0 0.0
    %697 = vmatprep.subr.mxu0 0.0
    %698 = vmatpush1.msra.mxu0 0.0
    %699 = vmatprep.subr.mxu0 0.0
    %700 = vmatpush1.msra.mxu0 0.0
    %701 = vmatprep.subr.mxu0 0.0
    %702 = vmatpush1.msra.mxu0 0.0
    %703 = vmatprep.subr.mxu0 0.0
    %704 = vmatpush1.msra.mxu0 0.0
    %705 = vmatprep.subr.mxu0 0.0
    %706 = vmatpush1.msra.mxu0 0.0
    %707 = vmatprep.subr.mxu0 0.0
    %708 = vmatpush1.msra.mxu0 0.0
    %709 = vmatprep.subr.mxu0 0.0
    %710 = vmatpush1.msra.mxu0 0.0
    %711 = vmatprep.subr.mxu0 0.0
    %712 = vmatpush1.msra.mxu0 0.0
    %713 = vmatprep.subr.mxu0 0.0
    %714 = vmatpush1.msra.mxu0 0.0
    %715 = vmatprep.subr.mxu0 0.0
    %716 = vmatpush1.msra.mxu0 0.0
    %717 = vmatprep.subr.mxu0 0.0
    %718 = vmatpush1.msra.mxu0 0.0
    %719 = vmatprep.subr.mxu0 0.0
    %720 = vmatpush1.msra.mxu0 0.0
    %721 = vmatprep.subr.mxu0 0.0
    %722 = vmatpush1.msra.mxu0 0.0
    %723 = vmatprep.subr.mxu0 0.0
    %724 = vmatpush1.msra.mxu0 0.0
    %725 = vmatprep.mubr.f32.mxu0 0.0
    %726 = vmatmul.mubr.f32.gmra.mrb[0].mxu0 %v659
    %v727 = vpop.f32.mrb[0].mxu0
    %v728 = vadd.f32 %v656, %v727
    %v729 = vpop.f32.mrb[0].mxu0
    %v730 = vadd.f32 %v656, %v729
    %731 = vdwg.mxu0
    %732 = vmatprep.subr.mxu0 %v539
    %733 = vmatpush1.msra.mxu0 %v538
    %734 = vmatprep.subr.mxu0 %v555
    %735 = vmatpush1.msra.mxu0 %v554
    %736 = vmatprep.subr.mxu0 %v571
    %737 = vmatpush1.msra.mxu0 %v570
    %738 = vmatprep.subr.mxu0 %v587
    %739 = vmatpush1.msra.mxu0 %v586
    %740 = vmatprep.subr.mxu0 %v522
    %741 = vmatpush1.msra.mxu0 %v521
    %742 = vmatprep.subr.mxu0 %v603
    %743 = vmatpush1.msra.mxu0 %v602
    %744 = vmatprep.subr.mxu0 %v619
    %745 = vmatpush1.msra.mxu0 %v618
    %746 = vmatprep.subr.mxu0 %v635
    %747 = vmatpush1.msra.mxu0 %v634
    %748 = vmatprep.subr.mxu0 %v651
    %749 = vmatpush1.msra.mxu0 %v650
    %750 = vmatprep.subr.mxu0 0.0
    %751 = vmatpush1.msra.mxu0 0.0
    %752 = vmatprep.subr.mxu0 0.0
    %753 = vmatpush1.msra.mxu0 0.0
    %754 = vmatprep.subr.mxu0 0.0
    %755 = vmatpush1.msra.mxu0 0.0
    %756 = vmatprep.subr.mxu0 0.0
    %757 = vmatpush1.msra.mxu0 0.0
    %758 = vmatprep.subr.mxu0 0.0
    %759 = vmatpush1.msra.mxu0 0.0
    %760 = vmatprep.subr.mxu0 0.0
    %761 = vmatpush1.msra.mxu0 0.0
    %762 = vmatprep.subr.mxu0 0.0
    %763 = vmatpush1.msra.mxu0 0.0
    %764 = vmatprep.subr.mxu0 0.0
    %765 = vmatpush1.msra.mxu0 0.0
    %766 = vmatprep.subr.mxu0 0.0
    %767 = vmatpush1.msra.mxu0 0.0
    %768 = vmatprep.subr.mxu0 0.0
    %769 = vmatpush1.msra.mxu0 0.0
    %770 = vmatprep.subr.mxu0 0.0
    %771 = vmatpush1.msra.mxu0 0.0
    %772 = vmatprep.subr.mxu0 0.0
    %773 = vmatpush1.msra.mxu0 0.0
    %774 = vmatprep.subr.mxu0 0.0
    %775 = vmatpush1.msra.mxu0 0.0
    %776 = vmatprep.subr.mxu0 0.0
    %777 = vmatpush1.msra.mxu0 0.0
    %778 = vmatprep.subr.mxu0 0.0
    %779 = vmatpush1.msra.mxu0 0.0
    %780 = vmatprep.subr.mxu0 0.0
    %781 = vmatpush1.msra.mxu0 0.0
    %782 = vmatprep.subr.mxu0 0.0
    %783 = vmatpush1.msra.mxu0 0.0
    %784 = vmatprep.subr.mxu0 0.0
    %785 = vmatpush1.msra.mxu0 0.0
    %786 = vmatprep.subr.mxu0 0.0
    %787 = vmatpush1.msra.mxu0 0.0
    %788 = vmatprep.subr.mxu0 0.0
    %789 = vmatpush1.msra.mxu0 0.0
    %790 = vmatprep.subr.mxu0 0.0
    %791 = vmatpush1.msra.mxu0 0.0
    %792 = vmatprep.subr.mxu0 0.0
    %793 = vmatpush1.msra.mxu0 0.0
    %794 = vmatprep.subr.mxu0 0.0
    %795 = vmatpush1.msra.mxu0 0.0
    %796 = vmatprep.mubr.f32.mxu0 0.0
    %797 = vmatmul.mubr.f32.gmra.mrb[0].mxu0 %v659
    %v798 = vpop.f32.mrb[0].mxu0
    %v799 = vadd.f32 %v656, %v798
    %v800 = vpop.f32.mrb[0].mxu0
    %v801 = vadd.f32 %v656, %v800
    %802 = vdwg.mxu0
    %v803 = vadd.f32 %v728, %v56
    %v804 = vadd.f32 %v730, %v57
    %v805 = vadd.f32 %v799, %v58
    %v806 = vadd.f32 %v801, %v59
    %v811 = vcombine.low %v803, %v804
    %v812 = vcombine.low %v805, %v806
    %815 = vst [vmem:[#allocation7] sm:$0xff] %v811
    %816 = vst [vmem:[#allocation7 + $0x8] sm:$0xff] %v812
    // Predicated region
    $region42: #{tpu_custom_call.1} parent=1 // pred_check
      _
    $region43: #{tpu_custom_call.1} parent=1 // pred_check_branch
      %818 = sbr.rel (0) target = $region45
    $region44: #{tpu_custom_call.1} parent=1 // pred_region
      %s820 = ssub.s32 256, 256
      %821 = vsyncadd [#allocation4], %s820
      %s823 = sshll.u32 [#allocation7], 4
      %s824 = int_to_ptr.vmem [resolvable:$true] %s823
      %826 = dma.vmem_to_hbm [thread:$0]  %s824, 256, %s8, [#allocation4]
    $region45: #{tpu_custom_call.1} parent=1 // pred_fallthru
      _
    // Predicated region
    $region46: #{tpu_custom_call.1} parent=1 // pred_check
      _
    $region47: #{tpu_custom_call.1} parent=1 // pred_check_branch
      %828 = sbr.rel (0) target = $region49
    $region48: #{tpu_custom_call.1} parent=1 // pred_region
      %829 = dma.done [#allocation4], 256
    $region49: #{tpu_custom_call.1} parent=1 // pred_fallthru
      _
    %830 = vsyncpa [#allocation3], 1
    %831 = vsyncpa [#allocation6], 1
    %832 = vsyncpa [#allocation4], 1

</llo_original>
